<compile_context>
chip_gen: v7x
topology: tpu7x:2x2x1
jax: 0.10.0
libtpu: 0.0.40
codegen_flags: <defaults>
</compile_context>

<pallas_src>
import numpy as np
import jax
import jax.numpy as jnp
from jax import lax
from jax.experimental import pallas as pl
from jax.experimental.pallas import tpu as pltpu

FIRST_LAYER = 5     # firstLayerSize
N_HIDDEN = 20       # n_hidden
LEAKY_RATE = 1.0    # LiESNCell(leaky_rate=1, ...)
# Set to lax.Precision.HIGHEST if bit-closeness to the f32 PyTorch reference matters
# (costs extra MXU passes on the serial chain on v6e/v7x); default accepts the drift.
MATMUL_PRECISION = None


def column_kernel(x_ref, w1t_ref, b1_ref, wint_ref, besn_ref,
                  wresbd_ref, woutbd_ref, bout_ref, out_ref,
                  z_scr, h_scr, h_state):
    """One time-chunk of the batched ESN forward.

    x_ref   : (B, Tc) f32             current time chunk of the inputs
    out_ref : (B, Tc) f32             current time chunk of the readout
    z_scr   : (Tc, B*N_HIDDEN) f32    hoisted input projections (off the serial chain)
    h_scr   : (Tc, B*N_HIDDEN) f32    reservoir state history (for the deferred readout)
    h_state : (1,  B*N_HIDDEN) f32    reservoir state carried across time chunks
    """
    B, Tc = x_ref.shape

    # Zero the carried reservoir state on the first time chunk.
    @pl.when(pl.program_id(0) == 0)
    def _():
        h_state[...] = jnp.zeros_like(h_state)

    # Hoist parameter loads out of the recurrent loop.
    w1t = w1t_ref[...]          # (1, FIRST_LAYER)           fc1.weight.T (in_features == 1)
    b1 = b1_ref[...]            # (1, FIRST_LAYER)
    win_t = wint_ref[...]       # (FIRST_LAYER, N_HIDDEN)    W_in.T
    besn = besn_ref[...]        # (1, N_HIDDEN)
    wres_bd = wresbd_ref[...]   # (B*N_HIDDEN, B*N_HIDDEN)   block-diag(W.T)
    wout_bd = woutbd_ref[...]   # (B*N_HIDDEN, B)            block-diag readout weight
    bout = bout_ref[...]        # (1, 1)

    # ---- hoisted input path (off the serial chain) -------------------------------------
    # Z[:, b*N:(b+1)*N] = tanh(x_b * W1^T + b1) @ Win^T + b_esn   (one matmul per batch
    # element per chunk; B is tiny and this is not on the recurrent critical path).
    x_tb = x_ref[...].T                                         # (Tc, B): one in-VMEM transpose
    for b in range(B):                                          # B small & static
        u_b = jnp.tanh(x_tb[:, b:b + 1] * w1t + b1)             # (Tc, FIRST_LAYER)
        z_scr[:, b * N_HIDDEN:(b + 1) * N_HIDDEN] = (
            jnp.dot(u_b, win_t, preferred_element_type=jnp.float32,
                    precision=MATMUL_PRECISION) + besn)         # (Tc, N_HIDDEN)

    # ---- serial recurrence: ONE dot + ONE tanh + ONE row store per step -----------------
    # TODO(synk): a further win would hold wres_bd in the MXU across the loop via
    #             pltpu.matmul_push_rhs / matmul_acc_lhs / matmul_pop; left on the
    #             well-supported jnp.dot lowering path here.
    def step(t, h):
        pre = z_scr[pl.ds(t, 1), :] + jnp.dot(
            h, wres_bd, preferred_element_type=jnp.float32,
            precision=MATMUL_PRECISION)                          # (1, B*N_HIDDEN)
        if LEAKY_RATE == 1.0:                                    # specialize a == 1
            h_new = jnp.tanh(pre)
        else:
            h_new = (1.0 - LEAKY_RATE) * h + LEAKY_RATE * jnp.tanh(pre)
        h_scr[pl.ds(t, 1), :] = h_new                            # off-chain history store
        return h_new

    h_last = lax.fori_loop(0, Tc, step, h_state[...],
                           unroll=True if Tc <= 64 else 16)
    h_state[...] = h_last                                        # carry across time chunks

    # ---- deferred readout: one stacked matmul + one layout fixup ------------------------
    y_tb = jnp.dot(h_scr[...], wout_bd, preferred_element_type=jnp.float32,
                   precision=MATMUL_PRECISION) + bout            # (Tc, B)
    out_ref[...] = y_tb.T.astype(out_ref.dtype)                  # (B, Tc)


def _pick_time_chunk(T, target=512):
    """Largest chunk <= target that is a multiple of 128 and divides T; else whole T."""
    if T <= target:
        return T
    tc = (target // 128) * 128
    while tc >= 128:
        if T % tc == 0:
            return tc
        tc -= 128
    return T


def column_forward(x, params, *, chunk_target=512):
    """x: (B, T, 1) float32 -> (B, T, 1) float32 (PyTorch-style layout)."""
    w1, b1, win, wres, besn, wout, bout = params
    B, T, _ = x.shape
    x2d = x.reshape(B, T)        # drop trailing singleton: layout-preserving, no HBM transpose

    # Wrapper-side glue: pre-transposed / batch-expanded (block-diagonal) weights so the
    # kernel runs the whole batch's recurrence and readout as single matmuls.  Tiny arrays.
    eye_b = jnp.eye(B, dtype=jnp.float32)
    w1t = w1.reshape(1, FIRST_LAYER)                          # (1, F)
    b1r = b1.reshape(1, FIRST_LAYER)                          # (1, F)
    win_t = win.T                                             # (F, N)
    besn_r = besn.reshape(1, N_HIDDEN)                        # (1, N)
    wres_bd = jnp.kron(eye_b, wres.T)                         # (B*N, B*N)
    wout_bd = jnp.kron(eye_b, wout.reshape(N_HIDDEN, 1))      # (B*N, B)
    bout_r = bout.reshape(1, 1)                               # (1, 1)

    Tc = _pick_time_chunk(T, chunk_target)
    num_chunks = T // Tc

    vmem = pl.BlockSpec(memory_space=pltpu.MemorySpace.VMEM)
    grid_spec = pltpu.PrefetchScalarGridSpec(
        num_scalar_prefetch=0,
        grid=(num_chunks,),                                   # time chunks, carried state
        in_specs=[pl.BlockSpec((B, Tc), lambda c: (0, c)),    # x: chunked over time
                  vmem, vmem, vmem, vmem, vmem, vmem, vmem],  # small params, whole in VMEM
        out_specs=pl.BlockSpec((B, Tc), lambda c: (0, c)),
        scratch_shapes=[pltpu.VMEM((Tc, B * N_HIDDEN), jnp.float32),   # Z: input projections
                        pltpu.VMEM((Tc, B * N_HIDDEN), jnp.float32),   # H: state history
                        pltpu.VMEM((1, B * N_HIDDEN), jnp.float32)],   # carried reservoir state
    )

    n_param = sum(int(np.prod(p.shape)) for p in
                  (w1t, b1r, win_t, besn_r, wres_bd, wout_bd, bout_r))
    cost = pl.CostEstimate(
        flops=2 * B * T * (FIRST_LAYER                       # fc1
                           + FIRST_LAYER * N_HIDDEN          # input projection
                           + N_HIDDEN * N_HIDDEN             # reservoir recurrence
                           + N_HIDDEN),                      # readout
        transcendentals=B * T * (FIRST_LAYER + N_HIDDEN),    # two tanh stages
        bytes_accessed=4 * (2 * B * T + n_param),
    )

    out2d = pl.pallas_call(
        column_kernel,
        out_shape=jax.ShapeDtypeStruct((B, T), jnp.float32),
        grid_spec=grid_spec,
        compiler_params=pltpu.CompilerParams(
            # Time chunks carry the reservoir state -> strictly sequential.
            # TODO(synk): on v7x (2 TCs) a leading "parallel" batch-group grid axis would
            #             use the second core; with B=2 (< one 8-sublane tile) it is not
            #             worth un-batching the single-dot recurrence, so it is omitted.
            dimension_semantics=("arbitrary",),
            vmem_limit_bytes=32 * 1024 * 1024,
        ),
        cost_estimate=cost,
    )(x2d, w1t, b1r, win_t, besn_r, wres_bd, wout_bd, bout_r)

    return out2d.reshape(B, T, 1)


def init_params(key):
    """Deterministic synthetic parameters matching the module's natural shapes."""
    ks = jax.random.split(key, 6)
    # fc1: Linear(1, 5)  -> weight (5,1), bias (5,)
    w1 = jax.random.uniform(ks[0], (FIRST_LAYER, 1), jnp.float32, -1.0, 1.0)
    b1 = jax.random.uniform(ks[1], (FIRST_LAYER,), jnp.float32, -1.0, 1.0)
    # LiESNCell(input_dim=5, output_dim=20): W_in (20,5), W (20,20), w_bias (20,)
    win = jax.random.uniform(ks[2], (N_HIDDEN, FIRST_LAYER), jnp.float32, -1.0, 1.0)
    wres = jax.random.uniform(ks[3], (N_HIDDEN, N_HIDDEN), jnp.float32, -1.0, 1.0)
    # Scale reservoir to spectral radius 0.9 (host-side init glue).
    wres_np = np.asarray(wres)
    rho = float(np.max(np.abs(np.linalg.eigvals(wres_np))))
    wres = jnp.asarray(wres_np * (0.9 / rho), jnp.float32)
    besn = jax.random.uniform(ks[4], (N_HIDDEN,), jnp.float32, -1.0, 1.0)
    # RRCell(20, 1): readout weight (20,1) + bias (1,1)
    wout = jax.random.uniform(ks[5], (N_HIDDEN, 1), jnp.float32, -1.0, 1.0)
    bout = jnp.zeros((1, 1), jnp.float32)
    return (w1, b1, win, wres, besn, wout, bout)


if __name__ == "__main__":
    key = jax.random.PRNGKey(0)
    k_x, k_p = jax.random.split(key)

    B, T = 2, 8                                   # small batch, short sequence, 1 feature
    x = jax.random.normal(k_x, (B, T, 1), jnp.float32)
    params = init_params(k_p)

    fwd = jax.jit(column_forward)
    out = jax.block_until_ready(fwd(x, params))
    assert out.shape == (B, T, 1) and out.dtype == jnp.float32
    assert bool(jnp.all(jnp.isfinite(out)))
    print("KERNEL_OK")
</pallas_src>

<mosaic_0001>
module attributes {stable_mosaic.version = 11 : i64} {
  func.func @column_kernel(%arg0: i32, %arg1: memref<2x8xf32, #tpu.memory_space<vmem>>, %arg2: memref<1x5xf32, #tpu.memory_space<vmem>>, %arg3: memref<1x5xf32, #tpu.memory_space<vmem>>, %arg4: memref<5x20xf32, #tpu.memory_space<vmem>>, %arg5: memref<1x20xf32, #tpu.memory_space<vmem>>, %arg6: memref<40x40xf32, #tpu.memory_space<vmem>>, %arg7: memref<40x2xf32, #tpu.memory_space<vmem>>, %arg8: memref<1x1xf32, #tpu.memory_space<vmem>>, %arg9: memref<2x8xf32, #tpu.memory_space<vmem>>, %arg10: memref<8x40xf32, #tpu.memory_space<vmem>>, %arg11: memref<8x40xf32, #tpu.memory_space<vmem>>, %arg12: memref<1x40xf32, #tpu.memory_space<vmem>>) attributes {dimension_semantics = [#tpu.dimension_semantics<arbitrary>], iteration_bounds = array<i64: 1>, scalar_prefetch = 0 : i64, scratch_operands = 3 : i64, tpu.core_type = #tpu.core_type<tc>, window_params = [{transform_indices = @transform_0, window_bounds = array<i64: 2, 8>}, {pipeline_mode = #tpu.pipeline_mode<synchronous>, transform_indices = @transform_1, window_bounds = array<i64: 1, 5>}, {pipeline_mode = #tpu.pipeline_mode<synchronous>, transform_indices = @transform_2, window_bounds = array<i64: 1, 5>}, {pipeline_mode = #tpu.pipeline_mode<synchronous>, transform_indices = @transform_3, window_bounds = array<i64: 5, 20>}, {pipeline_mode = #tpu.pipeline_mode<synchronous>, transform_indices = @transform_4, window_bounds = array<i64: 1, 20>}, {pipeline_mode = #tpu.pipeline_mode<synchronous>, transform_indices = @transform_5, window_bounds = array<i64: 40, 40>}, {pipeline_mode = #tpu.pipeline_mode<synchronous>, transform_indices = @transform_6, window_bounds = array<i64: 40, 2>}, {pipeline_mode = #tpu.pipeline_mode<synchronous>, transform_indices = @transform_7, window_bounds = array<i64: 1, 1>}, {transform_indices = @transform_8, window_bounds = array<i64: 2, 8>}]} {
    %c0_i32 = arith.constant 0 : i32
    %0 = arith.cmpi eq, %arg0, %c0_i32 : i32
    %1 = arith.extui %0 : i1 to i32
    %c0_i32_0 = arith.constant 0 : i32
    %2 = arith.cmpi ne, %1, %c0_i32_0 : i32
    scf.if %2 {
      %cst_54 = arith.constant 0.000000e+00 : f32
      %98 = vector.broadcast %cst_54 : f32 to vector<1x40xf32>
      %c0_55 = arith.constant 0 : index
      %c0_56 = arith.constant 0 : index
      %99 = vector.load %arg12[%c0_55, %c0_56] : memref<1x40xf32, #tpu.memory_space<vmem>>, vector<1x40xf32>
      tpu.vector_store %arg12[%c0_55, %c0_56], %98 {strides = array<i32>} : memref<1x40xf32, #tpu.memory_space<vmem>>, vector<1x40xf32>,
    } else {
    }
    %c0 = arith.constant 0 : index
    %c0_1 = arith.constant 0 : index
    %3 = vector.load %arg2[%c0, %c0_1] : memref<1x5xf32, #tpu.memory_space<vmem>>, vector<1x5xf32>
    %c0_2 = arith.constant 0 : index
    %c0_3 = arith.constant 0 : index
    %4 = vector.load %arg3[%c0_2, %c0_3] : memref<1x5xf32, #tpu.memory_space<vmem>>, vector<1x5xf32>
    %c0_4 = arith.constant 0 : index
    %c0_5 = arith.constant 0 : index
    %5 = vector.load %arg4[%c0_4, %c0_5] : memref<5x20xf32, #tpu.memory_space<vmem>>, vector<5x20xf32>
    %c0_6 = arith.constant 0 : index
    %c0_7 = arith.constant 0 : index
    %6 = vector.load %arg5[%c0_6, %c0_7] : memref<1x20xf32, #tpu.memory_space<vmem>>, vector<1x20xf32>
    %c0_8 = arith.constant 0 : index
    %c0_9 = arith.constant 0 : index
    %7 = vector.load %arg6[%c0_8, %c0_9] : memref<40x40xf32, #tpu.memory_space<vmem>>, vector<40x40xf32>
    %c0_10 = arith.constant 0 : index
    %c0_11 = arith.constant 0 : index
    %8 = vector.load %arg7[%c0_10, %c0_11] : memref<40x2xf32, #tpu.memory_space<vmem>>, vector<40x2xf32>
    %c0_12 = arith.constant 0 : index
    %c0_13 = arith.constant 0 : index
    %9 = vector.load %arg8[%c0_12, %c0_13] : memref<1x1xf32, #tpu.memory_space<vmem>>, vector<1x1xf32>
    %c0_14 = arith.constant 0 : index
    %c0_15 = arith.constant 0 : index
    %10 = vector.load %arg1[%c0_14, %c0_15] : memref<2x8xf32, #tpu.memory_space<vmem>>, vector<2x8xf32>
    %11 = tpu.transpose %10, [1, 0] : vector<2x8xf32> -> vector<8x2xf32>
    %12 = vector.extract_strided_slice %11 {offsets = [0, 0], sizes = [8, 1], strides = [1, 1]} : vector<8x2xf32> to vector<8x1xf32>
    %13 = vector.broadcast %12 : vector<8x1xf32> to vector<8x5xf32>
    %14 = vector.broadcast %3 : vector<1x5xf32> to vector<8x5xf32>
    %15 = arith.mulf %13, %14 : vector<8x5xf32>
    %16 = vector.broadcast %4 : vector<1x5xf32> to vector<8x5xf32>
    %17 = arith.addf %15, %16 : vector<8x5xf32>
    %18 = math.tanh %17 : vector<8x5xf32>
    %cst = arith.constant dense<0.000000e+00> : vector<8x20xf32>
    %19 = tpu.matmul %18, %5, %cst {dimension_numbers = #tpu.dot_dimension_numbers<[1], [0], [0], [1], [0, 0, 1, 1], [], []>} : vector<8x5xf32>, vector<5x20xf32>, vector<8x20xf32> -> vector<8x20xf32>
    %20 = vector.broadcast %6 : vector<1x20xf32> to vector<8x20xf32>
    %21 = arith.addf %19, %20 : vector<8x20xf32>
    %c0_16 = arith.constant 0 : index
    %c0_17 = arith.constant 0 : index
    %22 = vector.load %arg10[%c0_16, %c0_17] : memref<8x40xf32, #tpu.memory_space<vmem>>, vector<8x20xf32>
    tpu.vector_store %arg10[%c0_16, %c0_17], %21 {strides = array<i32>} : memref<8x40xf32, #tpu.memory_space<vmem>>, vector<8x20xf32>,
    %23 = vector.extract_strided_slice %11 {offsets = [0, 1], sizes = [8, 1], strides = [1, 1]} : vector<8x2xf32> to vector<8x1xf32>
    %24 = vector.broadcast %23 : vector<8x1xf32> to vector<8x5xf32>
    %25 = vector.broadcast %3 : vector<1x5xf32> to vector<8x5xf32>
    %26 = arith.mulf %24, %25 : vector<8x5xf32>
    %27 = vector.broadcast %4 : vector<1x5xf32> to vector<8x5xf32>
    %28 = arith.addf %26, %27 : vector<8x5xf32>
    %29 = math.tanh %28 : vector<8x5xf32>
    %cst_18 = arith.constant dense<0.000000e+00> : vector<8x20xf32>
    %30 = tpu.matmul %29, %5, %cst_18 {dimension_numbers = #tpu.dot_dimension_numbers<[1], [0], [0], [1], [0, 0, 1, 1], [], []>} : vector<8x5xf32>, vector<5x20xf32>, vector<8x20xf32> -> vector<8x20xf32>
    %31 = vector.broadcast %6 : vector<1x20xf32> to vector<8x20xf32>
    %32 = arith.addf %30, %31 : vector<8x20xf32>
    %c0_19 = arith.constant 0 : index
    %c20 = arith.constant 20 : index
    %33 = vector.load %arg10[%c0_19, %c20] : memref<8x40xf32, #tpu.memory_space<vmem>>, vector<8x20xf32>
    tpu.vector_store %arg10[%c0_19, %c20], %32 {strides = array<i32>} : memref<8x40xf32, #tpu.memory_space<vmem>>, vector<8x20xf32>,
    %c0_20 = arith.constant 0 : index
    %c0_21 = arith.constant 0 : index
    %34 = vector.load %arg12[%c0_20, %c0_21] : memref<1x40xf32, #tpu.memory_space<vmem>>, vector<1x40xf32>
    %c0_i32_22 = arith.constant 0 : i32
    %35 = arith.index_cast %c0_i32_22 : i32 to index
    %c0_23 = arith.constant 0 : index
    %36 = vector.load %arg10[%35, %c0_23] : memref<8x40xf32, #tpu.memory_space<vmem>>, vector<1x40xf32>
    %cst_24 = arith.constant dense<0.000000e+00> : vector<1x40xf32>
    %37 = tpu.matmul %34, %7, %cst_24 {dimension_numbers = #tpu.dot_dimension_numbers<[1], [0], [0], [1], [0, 0, 1, 1], [], []>} : vector<1x40xf32>, vector<40x40xf32>, vector<1x40xf32> -> vector<1x40xf32>
    %38 = arith.addf %36, %37 : vector<1x40xf32>
    %39 = math.tanh %38 : vector<1x40xf32>
    %40 = arith.index_cast %c0_i32_22 : i32 to index
    %c0_25 = arith.constant 0 : index
    %41 = vector.load %arg11[%40, %c0_25] : memref<8x40xf32, #tpu.memory_space<vmem>>, vector<1x40xf32>
    tpu.vector_store %arg11[%40, %c0_25], %39 {strides = array<i32>} : memref<8x40xf32, #tpu.memory_space<vmem>>, vector<1x40xf32>,
    %c1_i32 = arith.constant 1 : i32
    %42 = arith.index_cast %c1_i32 : i32 to index
    %c0_26 = arith.constant 0 : index
    %43 = vector.load %arg10[%42, %c0_26] : memref<8x40xf32, #tpu.memory_space<vmem>>, vector<1x40xf32>
    %cst_27 = arith.constant dense<0.000000e+00> : vector<1x40xf32>
    %44 = tpu.matmul %39, %7, %cst_27 {dimension_numbers = #tpu.dot_dimension_numbers<[1], [0], [0], [1], [0, 0, 1, 1], [], []>} : vector<1x40xf32>, vector<40x40xf32>, vector<1x40xf32> -> vector<1x40xf32>
    %45 = arith.addf %43, %44 : vector<1x40xf32>
    %46 = math.tanh %45 : vector<1x40xf32>
    %47 = arith.index_cast %c1_i32 : i32 to index
    %c0_28 = arith.constant 0 : index
    %48 = vector.load %arg11[%47, %c0_28] : memref<8x40xf32, #tpu.memory_space<vmem>>, vector<1x40xf32>
    tpu.vector_store %arg11[%47, %c0_28], %46 {strides = array<i32>} : memref<8x40xf32, #tpu.memory_space<vmem>>, vector<1x40xf32>,
    %c2_i32 = arith.constant 2 : i32
    %49 = arith.index_cast %c2_i32 : i32 to index
    %c0_29 = arith.constant 0 : index
    %50 = vector.load %arg10[%49, %c0_29] : memref<8x40xf32, #tpu.memory_space<vmem>>, vector<1x40xf32>
    %cst_30 = arith.constant dense<0.000000e+00> : vector<1x40xf32>
    %51 = tpu.matmul %46, %7, %cst_30 {dimension_numbers = #tpu.dot_dimension_numbers<[1], [0], [0], [1], [0, 0, 1, 1], [], []>} : vector<1x40xf32>, vector<40x40xf32>, vector<1x40xf32> -> vector<1x40xf32>
    %52 = arith.addf %50, %51 : vector<1x40xf32>
    %53 = math.tanh %52 : vector<1x40xf32>
    %54 = arith.index_cast %c2_i32 : i32 to index
    %c0_31 = arith.constant 0 : index
    %55 = vector.load %arg11[%54, %c0_31] : memref<8x40xf32, #tpu.memory_space<vmem>>, vector<1x40xf32>
    tpu.vector_store %arg11[%54, %c0_31], %53 {strides = array<i32>} : memref<8x40xf32, #tpu.memory_space<vmem>>, vector<1x40xf32>,
    %c3_i32 = arith.constant 3 : i32
    %56 = arith.index_cast %c3_i32 : i32 to index
    %c0_32 = arith.constant 0 : index
    %57 = vector.load %arg10[%56, %c0_32] : memref<8x40xf32, #tpu.memory_space<vmem>>, vector<1x40xf32>
    %cst_33 = arith.constant dense<0.000000e+00> : vector<1x40xf32>
    %58 = tpu.matmul %53, %7, %cst_33 {dimension_numbers = #tpu.dot_dimension_numbers<[1], [0], [0], [1], [0, 0, 1, 1], [], []>} : vector<1x40xf32>, vector<40x40xf32>, vector<1x40xf32> -> vector<1x40xf32>
    %59 = arith.addf %57, %58 : vector<1x40xf32>
    %60 = math.tanh %59 : vector<1x40xf32>
    %61 = arith.index_cast %c3_i32 : i32 to index
    %c0_34 = arith.constant 0 : index
    %62 = vector.load %arg11[%61, %c0_34] : memref<8x40xf32, #tpu.memory_space<vmem>>, vector<1x40xf32>
    tpu.vector_store %arg11[%61, %c0_34], %60 {strides = array<i32>} : memref<8x40xf32, #tpu.memory_space<vmem>>, vector<1x40xf32>,
    %c4_i32 = arith.constant 4 : i32
    %63 = arith.index_cast %c4_i32 : i32 to index
    %c0_35 = arith.constant 0 : index
    %64 = vector.load %arg10[%63, %c0_35] : memref<8x40xf32, #tpu.memory_space<vmem>>, vector<1x40xf32>
    %cst_36 = arith.constant dense<0.000000e+00> : vector<1x40xf32>
    %65 = tpu.matmul %60, %7, %cst_36 {dimension_numbers = #tpu.dot_dimension_numbers<[1], [0], [0], [1], [0, 0, 1, 1], [], []>} : vector<1x40xf32>, vector<40x40xf32>, vector<1x40xf32> -> vector<1x40xf32>
    %66 = arith.addf %64, %65 : vector<1x40xf32>
    %67 = math.tanh %66 : vector<1x40xf32>
    %68 = arith.index_cast %c4_i32 : i32 to index
    %c0_37 = arith.constant 0 : index
    %69 = vector.load %arg11[%68, %c0_37] : memref<8x40xf32, #tpu.memory_space<vmem>>, vector<1x40xf32>
    tpu.vector_store %arg11[%68, %c0_37], %67 {strides = array<i32>} : memref<8x40xf32, #tpu.memory_space<vmem>>, vector<1x40xf32>,
    %c5_i32 = arith.constant 5 : i32
    %70 = arith.index_cast %c5_i32 : i32 to index
    %c0_38 = arith.constant 0 : index
    %71 = vector.load %arg10[%70, %c0_38] : memref<8x40xf32, #tpu.memory_space<vmem>>, vector<1x40xf32>
    %cst_39 = arith.constant dense<0.000000e+00> : vector<1x40xf32>
    %72 = tpu.matmul %67, %7, %cst_39 {dimension_numbers = #tpu.dot_dimension_numbers<[1], [0], [0], [1], [0, 0, 1, 1], [], []>} : vector<1x40xf32>, vector<40x40xf32>, vector<1x40xf32> -> vector<1x40xf32>
    %73 = arith.addf %71, %72 : vector<1x40xf32>
    %74 = math.tanh %73 : vector<1x40xf32>
    %75 = arith.index_cast %c5_i32 : i32 to index
    %c0_40 = arith.constant 0 : index
    %76 = vector.load %arg11[%75, %c0_40] : memref<8x40xf32, #tpu.memory_space<vmem>>, vector<1x40xf32>
    tpu.vector_store %arg11[%75, %c0_40], %74 {strides = array<i32>} : memref<8x40xf32, #tpu.memory_space<vmem>>, vector<1x40xf32>,
    %c6_i32 = arith.constant 6 : i32
    %77 = arith.index_cast %c6_i32 : i32 to index
    %c0_41 = arith.constant 0 : index
    %78 = vector.load %arg10[%77, %c0_41] : memref<8x40xf32, #tpu.memory_space<vmem>>, vector<1x40xf32>
    %cst_42 = arith.constant dense<0.000000e+00> : vector<1x40xf32>
    %79 = tpu.matmul %74, %7, %cst_42 {dimension_numbers = #tpu.dot_dimension_numbers<[1], [0], [0], [1], [0, 0, 1, 1], [], []>} : vector<1x40xf32>, vector<40x40xf32>, vector<1x40xf32> -> vector<1x40xf32>
    %80 = arith.addf %78, %79 : vector<1x40xf32>
    %81 = math.tanh %80 : vector<1x40xf32>
    %82 = arith.index_cast %c6_i32 : i32 to index
    %c0_43 = arith.constant 0 : index
    %83 = vector.load %arg11[%82, %c0_43] : memref<8x40xf32, #tpu.memory_space<vmem>>, vector<1x40xf32>
    tpu.vector_store %arg11[%82, %c0_43], %81 {strides = array<i32>} : memref<8x40xf32, #tpu.memory_space<vmem>>, vector<1x40xf32>,
    %c7_i32 = arith.constant 7 : i32
    %84 = arith.index_cast %c7_i32 : i32 to index
    %c0_44 = arith.constant 0 : index
    %85 = vector.load %arg10[%84, %c0_44] : memref<8x40xf32, #tpu.memory_space<vmem>>, vector<1x40xf32>
    %cst_45 = arith.constant dense<0.000000e+00> : vector<1x40xf32>
    %86 = tpu.matmul %81, %7, %cst_45 {dimension_numbers = #tpu.dot_dimension_numbers<[1], [0], [0], [1], [0, 0, 1, 1], [], []>} : vector<1x40xf32>, vector<40x40xf32>, vector<1x40xf32> -> vector<1x40xf32>
    %87 = arith.addf %85, %86 : vector<1x40xf32>
    %88 = math.tanh %87 : vector<1x40xf32>
    %89 = arith.index_cast %c7_i32 : i32 to index
    %c0_46 = arith.constant 0 : index
    %90 = vector.load %arg11[%89, %c0_46] : memref<8x40xf32, #tpu.memory_space<vmem>>, vector<1x40xf32>
    tpu.vector_store %arg11[%89, %c0_46], %88 {strides = array<i32>} : memref<8x40xf32, #tpu.memory_space<vmem>>, vector<1x40xf32>,
    %c8_i32 = arith.constant 8 : i32
    %c0_47 = arith.constant 0 : index
    %c0_48 = arith.constant 0 : index
    %91 = vector.load %arg12[%c0_47, %c0_48] : memref<1x40xf32, #tpu.memory_space<vmem>>, vector<1x40xf32>
    tpu.vector_store %arg12[%c0_47, %c0_48], %88 {strides = array<i32>} : memref<1x40xf32, #tpu.memory_space<vmem>>, vector<1x40xf32>,
    %c0_49 = arith.constant 0 : index
    %c0_50 = arith.constant 0 : index
    %92 = vector.load %arg11[%c0_49, %c0_50] : memref<8x40xf32, #tpu.memory_space<vmem>>, vector<8x40xf32>
    %cst_51 = arith.constant dense<0.000000e+00> : vector<8x2xf32>
    %93 = tpu.matmul %92, %8, %cst_51 {dimension_numbers = #tpu.dot_dimension_numbers<[1], [0], [0], [1], [0, 0, 1, 1], [], []>} : vector<8x40xf32>, vector<40x2xf32>, vector<8x2xf32> -> vector<8x2xf32>
    %94 = vector.broadcast %9 : vector<1x1xf32> to vector<8x2xf32>
    %95 = arith.addf %93, %94 : vector<8x2xf32>
    %96 = tpu.transpose %95, [1, 0] : vector<8x2xf32> -> vector<2x8xf32>
    %c0_52 = arith.constant 0 : index
    %c0_53 = arith.constant 0 : index
    %97 = vector.load %arg9[%c0_52, %c0_53] : memref<2x8xf32, #tpu.memory_space<vmem>>, vector<2x8xf32>
    tpu.vector_store %arg9[%c0_52, %c0_53], %96 {strides = array<i32>} : memref<2x8xf32, #tpu.memory_space<vmem>>, vector<2x8xf32>,
    return
  }
  func.func @transform_0(%arg0: i32) -> (i32, i32) {
    %c0_i32 = arith.constant 0 : i32
    %c0_i32_0 = arith.constant 0 : i32
    return %c0_i32, %arg0 : i32, i32
  }
  func.func @transform_1(%arg0: i32) -> (i32, i32) {
    %c0_i32 = arith.constant 0 : i32
    %c0_i32_0 = arith.constant 0 : i32
    %c0_i32_1 = arith.constant 0 : i32
    return %c0_i32, %c0_i32_0 : i32, i32
  }
  func.func @transform_2(%arg0: i32) -> (i32, i32) {
    %c0_i32 = arith.constant 0 : i32
    %c0_i32_0 = arith.constant 0 : i32
    %c0_i32_1 = arith.constant 0 : i32
    return %c0_i32, %c0_i32_0 : i32, i32
  }
  func.func @transform_3(%arg0: i32) -> (i32, i32) {
    %c0_i32 = arith.constant 0 : i32
    %c0_i32_0 = arith.constant 0 : i32
    %c0_i32_1 = arith.constant 0 : i32
    return %c0_i32, %c0_i32_0 : i32, i32
  }
  func.func @transform_4(%arg0: i32) -> (i32, i32) {
    %c0_i32 = arith.constant 0 : i32
    %c0_i32_0 = arith.constant 0 : i32
    %c0_i32_1 = arith.constant 0 : i32
    return %c0_i32, %c0_i32_0 : i32, i32
  }
  func.func @transform_5(%arg0: i32) -> (i32, i32) {
    %c0_i32 = arith.constant 0 : i32
    %c0_i32_0 = arith.constant 0 : i32
    %c0_i32_1 = arith.constant 0 : i32
    return %c0_i32, %c0_i32_0 : i32, i32
  }
  func.func @transform_6(%arg0: i32) -> (i32, i32) {
    %c0_i32 = arith.constant 0 : i32
    %c0_i32_0 = arith.constant 0 : i32
    %c0_i32_1 = arith.constant 0 : i32
    return %c0_i32, %c0_i32_0 : i32, i32
  }
  func.func @transform_7(%arg0: i32) -> (i32, i32) {
    %c0_i32 = arith.constant 0 : i32
    %c0_i32_0 = arith.constant 0 : i32
    %c0_i32_1 = arith.constant 0 : i32
    return %c0_i32, %c0_i32_0 : i32, i32
  }
  func.func @transform_8(%arg0: i32) -> (i32, i32) {
    %c0_i32 = arith.constant 0 : i32
    %c0_i32_0 = arith.constant 0 : i32
    return %c0_i32, %arg0 : i32, i32
  }
}

</mosaic_0001>

<llo_original>
// kernel: column_forward.1
$region0: #{column_forward.1}
  #allocation0 [shape = 'u32[]', space=smem, size = 0x4, offset = 0x4, fixed_abs, tag = 'smem constant byte address 0x4 - core index']
  #allocation1 [shape = 'u32[144,128]{1,0:T(1,128)}', space=vmem, size = 0x12000, scoped, tag = 'internal scratch']
  #allocation2 [shape = 'f32[8,40]{1,0:T(8,128)}', space=vmem, size = 0x1000, scoped, tag = 'scratch operand']
  #allocation3 [shape = 'f32[8,40]{1,0:T(8,128)}', space=vmem, size = 0x1000, scoped, tag = 'scratch operand']
  #allocation4 [shape = 'f32[1,40]{1,0:T(1,128)}', space=vmem, size = 0x200, scoped, tag = 'scratch operand']
  #allocation5 [shape = 'f32[1,1]{1,0:T(1,128)S(1)}', space=vmem, size = 0x200, scoped, tag = 'scoped memory for column_forward.1']
  %s0 = inlined_call_operand.vmem [shape: f32[2,8], index: 0, kind: input, shape index: {}]
  %s1 = inlined_call_operand.vmem [shape: f32[1,5], index: 1, kind: input, shape index: {}]
  %s2 = inlined_call_operand.vmem [shape: f32[1,5], index: 2, kind: input, shape index: {}]
  %s3 = inlined_call_operand.vmem [shape: f32[5,20], index: 3, kind: input, shape index: {}]
  %s4 = inlined_call_operand.vmem [shape: f32[1,20], index: 4, kind: input, shape index: {}]
  %s5 = inlined_call_operand.vmem [shape: f32[40,40], index: 5, kind: input, shape index: {}]
  %s6 = inlined_call_operand.vmem [shape: f32[40,2], index: 6, kind: input, shape index: {}]
  %s7 = inlined_call_operand.<no memory space> [shape: f32[1,1], index: 7, kind: input, shape index: {}]
  %s8 = inlined_call_operand.hbm [shape: f32[2,8], index: 8, kind: output, shape index: {}]
  %s9 = sld [smem:[#allocation0]]
  $region46: #{column_forward.1} parent=0
    _
  %s11 = ssub.s32 1, %s9
  %s12 = scalar_select 0, %s11, %s9
  %v13 = vstv %s7
  %14 = vst [vmem:[#allocation5] sm:$0x1] %v13
  $region1: #{column_forward.1} parent=0
    #allocation6 [shape = 'u8[1024]{0}', space=vmem, size = 0x400, scoped, tag = 'output window, operand 0, single buffered']
    #allocation7 [shape = 's32[1]{0}', space=sflag, size = 0x4, scoped, tag = 'scoped memory for column_forward.1']
    %15 = vsyncpa [#allocation7], 0
    // Predicated region
    $region2: #{column_forward.1} parent=1 // pred_check
      _
    $region3: #{column_forward.1} parent=1 // pred_check_branch
      %17 = sbr.rel (0) target = $region5
    $region4: #{column_forward.1} parent=1 // pred_region
      _
    $region5: #{column_forward.1} parent=1 // pred_fallthru
      _
    // Predicated region
    $region6: #{column_forward.1} parent=1 // pred_check
      _
    $region7: #{column_forward.1} parent=1 // pred_check_branch
      %19 = sbr.rel (0) target = $region9
    $region8: #{column_forward.1} parent=1 // pred_region
      _
    $region9: #{column_forward.1} parent=1 // pred_fallthru
      _
    // Predicated region
    $region10: #{column_forward.1} parent=1 // pred_check
      _
    $region11: #{column_forward.1} parent=1 // pred_check_branch
      %21 = sbr.rel (0) target = $region13
    $region12: #{column_forward.1} parent=1 // pred_region
      _
    $region13: #{column_forward.1} parent=1 // pred_fallthru
      _
    // Predicated region
    $region14: #{column_forward.1} parent=1 // pred_check
      _
    $region15: #{column_forward.1} parent=1 // pred_check_branch
      %23 = sbr.rel (0) target = $region17
    $region16: #{column_forward.1} parent=1 // pred_region
      _
    $region17: #{column_forward.1} parent=1 // pred_fallthru
      _
    // Predicated region
    $region18: #{column_forward.1} parent=1 // pred_check
      _
    $region19: #{column_forward.1} parent=1 // pred_check_branch
      %25 = sbr.rel (0) target = $region21
    $region20: #{column_forward.1} parent=1 // pred_region
      _
    $region21: #{column_forward.1} parent=1 // pred_fallthru
      _
    // Predicated region
    $region22: #{column_forward.1} parent=1 // pred_check
      _
    $region23: #{column_forward.1} parent=1 // pred_check_branch
      %27 = sbr.rel (0) target = $region25
    $region24: #{column_forward.1} parent=1 // pred_region
      _
    $region25: #{column_forward.1} parent=1 // pred_fallthru
      _
    // Predicated region
    $region26: #{column_forward.1} parent=1 // pred_check
      _
    $region27: #{column_forward.1} parent=1 // pred_check_branch
      %29 = sbr.rel (0) target = $region29
    $region28: #{column_forward.1} parent=1 // pred_region
      _
    $region29: #{column_forward.1} parent=1 // pred_fallthru
      _
    // Predicated region
    $region30: #{column_forward.1} parent=1 // pred_check
      _
    $region31: #{column_forward.1} parent=1 // pred_check_branch
      %31 = sbr.rel (0) target = $region33
    $region32: #{column_forward.1} parent=1 // pred_region
      _
    $region33: #{column_forward.1} parent=1 // pred_fallthru
      _
    %p32 = scmp.eq.s32.totalorder 0, 0
    // Predicated region
    $region34: #{column_forward.1} parent=1 // pred_check
      %p33 = pneg %p32
    $region35: #{column_forward.1} parent=1 // pred_check_branch
      %35 = sbr.rel (%p33) target = $region37
    $region36: #{column_forward.1} parent=1 // pred_region
      %vm36 = vcmask 319488
      %37 = vst.msk [vmem:[#allocation4] sm:$0x1] %vm36, 0.0
    $region37: #{column_forward.1} parent=1 // pred_fallthru
      _
    %v38 = vld [vmem:[%s1] sm:$0x1]
    %v39 = vld [vmem:[%s2] sm:$0x1]
    %v40 = vld [vmem:[%s3] sm:$0x1f]
    %v41 = vld [vmem:[%s4] sm:$0x1]
    %v42 = vld [vmem:[%s5] sm:$0xff]
    %v43 = vld [vmem:[%s5 + $0x8] sm:$0xff]
    %v44 = vld [vmem:[%s5 + $0x10] sm:$0xff]
    %v45 = vld [vmem:[%s5 + $0x18] sm:$0xff]
    %v46 = vld [vmem:[%s5 + $0x20] sm:$0xff]
    %v47 = vld [vmem:[%s6] sm:$0xff]
    %v48 = vld [vmem:[%s6 + $0x8] sm:$0xff]
    %v49 = vld [vmem:[%s6 + $0x10] sm:$0xff]
    %v50 = vld [vmem:[%s6 + $0x18] sm:$0xff]
    %v51 = vld [vmem:[%s6 + $0x20] sm:$0xff]
    %v52 = vld [vmem:[#allocation5] sm:$0x1]
    %v53 = vld [vmem:[%s0] sm:$0x3]
    %54 = vxpose.xlu0.b32.start [1/16] %v53, 128
    %55 = vxpose.xlu0.b32.cont [2/16] 0.0, 128
    %56 = vxpose.xlu0.b32.cont [3/16] 0.0, 128
    %57 = vxpose.xlu0.b32.cont [4/16] 0.0, 128
    %58 = vxpose.xlu0.b32.cont [5/16] 0.0, 128
    %59 = vxpose.xlu0.b32.cont [6/16] 0.0, 128
    %60 = vxpose.xlu0.b32.cont [7/16] 0.0, 128
    %61 = vxpose.xlu0.b32.cont [8/16] 0.0, 128
    %62 = vxpose.xlu0.b32.cont [9/16] 0.0, 128
    %63 = vxpose.xlu0.b32.cont [10/16] 0.0, 128
    %64 = vxpose.xlu0.b32.cont [11/16] 0.0, 128
    %65 = vxpose.xlu0.b32.cont [12/16] 0.0, 128
    %66 = vxpose.xlu0.b32.cont [13/16] 0.0, 128
    %67 = vxpose.xlu0.b32.cont [14/16] 0.0, 128
    %68 = vxpose.xlu0.b32.cont [15/16] 0.0, 128
    %69 = vxpose.xlu0.b32.end [16/16] 0.0, 128
    %v70 = vpop.trf.xlu0
    %v71 = vpop.trf.xlu0
    %v72 = vpop.trf.xlu0
    %v73 = vpop.trf.xlu0
    %v74 = vpop.trf.xlu0
    %v75 = vpop.trf.xlu0
    %v76 = vpop.trf.xlu0
    %v77 = vpop.trf.xlu0
    %v78 = vpop.trf.xlu0
    %v79 = vpop.trf.xlu0
    %v80 = vpop.trf.xlu0
    %v81 = vpop.trf.xlu0
    %v82 = vpop.trf.xlu0
    %v83 = vpop.trf.xlu0
    %v84 = vpop.trf.xlu0
    %v85 = vpop.trf.xlu0
    %87 = vset.pattern.permute.xlu0 0
    %88 = vperm.xlu0 %87, %v70
    %v89 = vpop.permute.xlu0 %88
    %v92 = vlaneseq
    %v93 = vshrl.u32 %v92, 7
    %v94 = vsub.s32 0, %v93
    %v95 = vrot.slane %v38, %v94
    %v97 = vmul.f32 %v89, %v95
    %v99 = vlaneseq
    %v100 = vshrl.u32 %v99, 7
    %v101 = vsub.s32 0, %v100
    %v102 = vrot.slane %v39, %v101
    %v104 = vadd.f32 %v97, %v102
    %v105 = vtanh.pop %v104
    %v107 = vlaneseq
    %v108 = vshrl.u32 %v107, 7
    %v109 = vsub.s32 0, %v108
    %v110 = vrot.slane %v41, %v109
    %vm112 = vcmask 39936
    %v114 = vsel %vm112, %v105, 0
    %vm116 = vcmask 1044480
    %v118 = vsel %vm116, %v40, 0
    %120 = vmatprep.subr.mxu0 0.0
    %121 = vmatpush1.msra.mxu0 %v118
    %122 = vmatprep.subr.mxu0 0.0
    %123 = vmatpush1.msra.mxu0 0.0
    %124 = vmatprep.subr.mxu0 0.0
    %125 = vmatpush1.msra.mxu0 0.0
    %126 = vmatprep.subr.mxu0 0.0
    %127 = vmatpush1.msra.mxu0 0.0
    %128 = vmatprep.subr.mxu0 0.0
    %129 = vmatpush1.msra.mxu0 0.0
    %130 = vmatprep.subr.mxu0 0.0
    %131 = vmatpush1.msra.mxu0 0.0
    %132 = vmatprep.subr.mxu0 0.0
    %133 = vmatpush1.msra.mxu0 0.0
    %134 = vmatprep.subr.mxu0 0.0
    %135 = vmatpush1.msra.mxu0 0.0
    %136 = vmatprep.subr.mxu0 0.0
    %137 = vmatpush1.msra.mxu0 0.0
    %138 = vmatprep.subr.mxu0 0.0
    %139 = vmatpush1.msra.mxu0 0.0
    %140 = vmatprep.subr.mxu0 0.0
    %141 = vmatpush1.msra.mxu0 0.0
    %142 = vmatprep.subr.mxu0 0.0
    %143 = vmatpush1.msra.mxu0 0.0
    %144 = vmatprep.subr.mxu0 0.0
    %145 = vmatpush1.msra.mxu0 0.0
    %146 = vmatprep.subr.mxu0 0.0
    %147 = vmatpush1.msra.mxu0 0.0
    %148 = vmatprep.subr.mxu0 0.0
    %149 = vmatpush1.msra.mxu0 0.0
    %150 = vmatprep.subr.mxu0 0.0
    %151 = vmatpush1.msra.mxu0 0.0
    %152 = vmatprep.subr.mxu0 0.0
    %153 = vmatpush1.msra.mxu0 0.0
    %154 = vmatprep.subr.mxu0 0.0
    %155 = vmatpush1.msra.mxu0 0.0
    %156 = vmatprep.subr.mxu0 0.0
    %157 = vmatpush1.msra.mxu0 0.0
    %158 = vmatprep.subr.mxu0 0.0
    %159 = vmatpush1.msra.mxu0 0.0
    %160 = vmatprep.subr.mxu0 0.0
    %161 = vmatpush1.msra.mxu0 0.0
    %162 = vmatprep.subr.mxu0 0.0
    %163 = vmatpush1.msra.mxu0 0.0
    %164 = vmatprep.subr.mxu0 0.0
    %165 = vmatpush1.msra.mxu0 0.0
    %166 = vmatprep.subr.mxu0 0.0
    %167 = vmatpush1.msra.mxu0 0.0
    %168 = vmatprep.subr.mxu0 0.0
    %169 = vmatpush1.msra.mxu0 0.0
    %170 = vmatprep.subr.mxu0 0.0
    %171 = vmatpush1.msra.mxu0 0.0
    %172 = vmatprep.subr.mxu0 0.0
    %173 = vmatpush1.msra.mxu0 0.0
    %174 = vmatprep.subr.mxu0 0.0
    %175 = vmatpush1.msra.mxu0 0.0
    %176 = vmatprep.subr.mxu0 0.0
    %177 = vmatpush1.msra.mxu0 0.0
    %178 = vmatprep.subr.mxu0 0.0
    %179 = vmatpush1.msra.mxu0 0.0
    %180 = vmatprep.subr.mxu0 0.0
    %181 = vmatpush1.msra.mxu0 0.0
    %182 = vmatprep.subr.mxu0 0.0
    %183 = vmatpush1.msra.mxu0 0.0
    %184 = vmatprep.mubr.f32.mxu0 0.0
    %185 = vmatmul.mubr.f32.gmra.mrb[0].mxu0 %v114
    %v186 = vpop.f32.mrb[0].mxu0
    %v187 = vadd.f32 %v110, %v186
    %v188 = vpop.f32.mrb[0].mxu0
    %189 = vdwg.mxu0
    %vm190 = vcmask 162816
    %191 = vst.msk [vmem:[#allocation2] sm:$0xff] %vm190, %v187
    %192 = vset.pattern.permute.xlu0 1
    %193 = vperm.xlu0 %192, %v70
    %v194 = vpop.permute.xlu0 %193
    %v196 = vmul.f32 %v194, %v95
    %v197 = vadd.f32 %v196, %v102
    %v198 = vtanh.pop %v197
    %v200 = vsel %vm112, %v198, 0
    %202 = vmatprep.subr.mxu0 0.0
    %203 = vmatpush1.msra.mxu0 %v118
    %204 = vmatprep.subr.mxu0 0.0
    %205 = vmatpush1.msra.mxu0 0.0
    %206 = vmatprep.subr.mxu0 0.0
    %207 = vmatpush1.msra.mxu0 0.0
    %208 = vmatprep.subr.mxu0 0.0
    %209 = vmatpush1.msra.mxu0 0.0
    %210 = vmatprep.subr.mxu0 0.0
    %211 = vmatpush1.msra.mxu0 0.0
    %212 = vmatprep.subr.mxu0 0.0
    %213 = vmatpush1.msra.mxu0 0.0
    %214 = vmatprep.subr.mxu0 0.0
    %215 = vmatpush1.msra.mxu0 0.0
    %216 = vmatprep.subr.mxu0 0.0
    %217 = vmatpush1.msra.mxu0 0.0
    %218 = vmatprep.subr.mxu0 0.0
    %219 = vmatpush1.msra.mxu0 0.0
    %220 = vmatprep.subr.mxu0 0.0
    %221 = vmatpush1.msra.mxu0 0.0
    %222 = vmatprep.subr.mxu0 0.0
    %223 = vmatpush1.msra.mxu0 0.0
    %224 = vmatprep.subr.mxu0 0.0
    %225 = vmatpush1.msra.mxu0 0.0
    %226 = vmatprep.subr.mxu0 0.0
    %227 = vmatpush1.msra.mxu0 0.0
    %228 = vmatprep.subr.mxu0 0.0
    %229 = vmatpush1.msra.mxu0 0.0
    %230 = vmatprep.subr.mxu0 0.0
    %231 = vmatpush1.msra.mxu0 0.0
    %232 = vmatprep.subr.mxu0 0.0
    %233 = vmatpush1.msra.mxu0 0.0
    %234 = vmatprep.subr.mxu0 0.0
    %235 = vmatpush1.msra.mxu0 0.0
    %236 = vmatprep.subr.mxu0 0.0
    %237 = vmatpush1.msra.mxu0 0.0
    %238 = vmatprep.subr.mxu0 0.0
    %239 = vmatpush1.msra.mxu0 0.0
    %240 = vmatprep.subr.mxu0 0.0
    %241 = vmatpush1.msra.mxu0 0.0
    %242 = vmatprep.subr.mxu0 0.0
    %243 = vmatpush1.msra.mxu0 0.0
    %244 = vmatprep.subr.mxu0 0.0
    %245 = vmatpush1.msra.mxu0 0.0
    %246 = vmatprep.subr.mxu0 0.0
    %247 = vmatpush1.msra.mxu0 0.0
    %248 = vmatprep.subr.mxu0 0.0
    %249 = vmatpush1.msra.mxu0 0.0
    %250 = vmatprep.subr.mxu0 0.0
    %251 = vmatpush1.msra.mxu0 0.0
    %252 = vmatprep.subr.mxu0 0.0
    %253 = vmatpush1.msra.mxu0 0.0
    %254 = vmatprep.subr.mxu0 0.0
    %255 = vmatpush1.msra.mxu0 0.0
    %256 = vmatprep.subr.mxu0 0.0
    %257 = vmatpush1.msra.mxu0 0.0
    %258 = vmatprep.subr.mxu0 0.0
    %259 = vmatpush1.msra.mxu0 0.0
    %260 = vmatprep.subr.mxu0 0.0
    %261 = vmatpush1.msra.mxu0 0.0
    %262 = vmatprep.subr.mxu0 0.0
    %263 = vmatpush1.msra.mxu0 0.0
    %264 = vmatprep.subr.mxu0 0.0
    %265 = vmatpush1.msra.mxu0 0.0
    %266 = vmatprep.mubr.f32.mxu0 0.0
    %267 = vmatmul.mubr.f32.gmra.mrb[0].mxu0 %v200
    %v268 = vpop.f32.mrb[0].mxu0
    %v269 = vadd.f32 %v110, %v268
    %v270 = vpop.f32.mrb[0].mxu0
    %271 = vdwg.mxu0
    %273 = vrot.lane.b32.xlu0 %v269, 20
    %v274 = vpop.permute.xlu0 %273
    %vm276 = vcmask 326816
    %277 = vst.msk [vmem:[#allocation2] sm:$0xff] %vm276, %v274
    %v278 = vld [vmem:[#allocation4] sm:$0x1]
    %v279 = vld [vmem:[#allocation2] sm:$0x1]
    %vm280 = vcmask 326656
    %v282 = vsel %vm280, %v278, 0
    %284 = vmatprep.subr.mxu0 0.0
    %285 = vmatpush1.msra.mxu0 %v42
    %286 = vmatprep.subr.mxu0 0.0
    %287 = vmatpush1.msra.mxu0 %v43
    %288 = vmatprep.subr.mxu0 0.0
    %289 = vmatpush1.msra.mxu0 %v44
    %290 = vmatprep.subr.mxu0 0.0
    %291 = vmatpush1.msra.mxu0 %v45
    %292 = vmatprep.subr.mxu0 0.0
    %293 = vmatpush1.msra.mxu0 %v46
    %294 = vmatprep.subr.mxu0 0.0
    %295 = vmatpush1.msra.mxu0 0.0
    %296 = vmatprep.subr.mxu0 0.0
    %297 = vmatpush1.msra.mxu0 0.0
    %298 = vmatprep.subr.mxu0 0.0
    %299 = vmatpush1.msra.mxu0 0.0
    %300 = vmatprep.subr.mxu0 0.0
    %301 = vmatpush1.msra.mxu0 0.0
    %302 = vmatprep.subr.mxu0 0.0
    %303 = vmatpush1.msra.mxu0 0.0
    %304 = vmatprep.subr.mxu0 0.0
    %305 = vmatpush1.msra.mxu0 0.0
    %306 = vmatprep.subr.mxu0 0.0
    %307 = vmatpush1.msra.mxu0 0.0
    %308 = vmatprep.subr.mxu0 0.0
    %309 = vmatpush1.msra.mxu0 0.0
    %310 = vmatprep.subr.mxu0 0.0
    %311 = vmatpush1.msra.mxu0 0.0
    %312 = vmatprep.subr.mxu0 0.0
    %313 = vmatpush1.msra.mxu0 0.0
    %314 = vmatprep.subr.mxu0 0.0
    %315 = vmatpush1.msra.mxu0 0.0
    %316 = vmatprep.subr.mxu0 0.0
    %317 = vmatpush1.msra.mxu0 0.0
    %318 = vmatprep.subr.mxu0 0.0
    %319 = vmatpush1.msra.mxu0 0.0
    %320 = vmatprep.subr.mxu0 0.0
    %321 = vmatpush1.msra.mxu0 0.0
    %322 = vmatprep.subr.mxu0 0.0
    %323 = vmatpush1.msra.mxu0 0.0
    %324 = vmatprep.subr.mxu0 0.0
    %325 = vmatpush1.msra.mxu0 0.0
    %326 = vmatprep.subr.mxu0 0.0
    %327 = vmatpush1.msra.mxu0 0.0
    %328 = vmatprep.subr.mxu0 0.0
    %329 = vmatpush1.msra.mxu0 0.0
    %330 = vmatprep.subr.mxu0 0.0
    %331 = vmatpush1.msra.mxu0 0.0
    %332 = vmatprep.subr.mxu0 0.0
    %333 = vmatpush1.msra.mxu0 0.0
    %334 = vmatprep.subr.mxu0 0.0
    %335 = vmatpush1.msra.mxu0 0.0
    %336 = vmatprep.subr.mxu0 0.0
    %337 = vmatpush1.msra.mxu0 0.0
    %338 = vmatprep.subr.mxu0 0.0
    %339 = vmatpush1.msra.mxu0 0.0
    %340 = vmatprep.subr.mxu0 0.0
    %341 = vmatpush1.msra.mxu0 0.0
    %342 = vmatprep.subr.mxu0 0.0
    %343 = vmatpush1.msra.mxu0 0.0
    %344 = vmatprep.subr.mxu0 0.0
    %345 = vmatpush1.msra.mxu0 0.0
    %346 = vmatprep.subr.mxu0 0.0
    %347 = vmatpush1.msra.mxu0 0.0
    %348 = vmatprep.mubr.f32.mxu0 0.0
    %349 = vmatmul.mubr.f32.gmra.mrb[0].mxu0 %v282
    %v350 = vpop.f32.mrb[0].mxu0
    %v351 = vadd.f32 0.0, %v350
    %v352 = vpop.f32.mrb[0].mxu0
    %353 = vdwg.mxu0
    %v354 = vadd.f32 %v279, %v351
    %v355 = vtanh.pop %v354
    %vm356 = vcmask 319488
    %357 = vst.msk [vmem:[#allocation3] sm:$0x1] %vm356, %v355
    %v358 = vld [vmem:[#allocation2 + $0x1] sm:$0x1]
    %v360 = vsel %vm280, %v355, 0
    %362 = vmatprep.subr.mxu0 0.0
    %363 = vmatpush1.msra.mxu0 %v42
    %364 = vmatprep.subr.mxu0 0.0
    %365 = vmatpush1.msra.mxu0 %v43
    %366 = vmatprep.subr.mxu0 0.0
    %367 = vmatpush1.msra.mxu0 %v44
    %368 = vmatprep.subr.mxu0 0.0
    %369 = vmatpush1.msra.mxu0 %v45
    %370 = vmatprep.subr.mxu0 0.0
    %371 = vmatpush1.msra.mxu0 %v46
    %372 = vmatprep.subr.mxu0 0.0
    %373 = vmatpush1.msra.mxu0 0.0
    %374 = vmatprep.subr.mxu0 0.0
    %375 = vmatpush1.msra.mxu0 0.0
    %376 = vmatprep.subr.mxu0 0.0
    %377 = vmatpush1.msra.mxu0 0.0
    %378 = vmatprep.subr.mxu0 0.0
    %379 = vmatpush1.msra.mxu0 0.0
    %380 = vmatprep.subr.mxu0 0.0
    %381 = vmatpush1.msra.mxu0 0.0
    %382 = vmatprep.subr.mxu0 0.0
    %383 = vmatpush1.msra.mxu0 0.0
    %384 = vmatprep.subr.mxu0 0.0
    %385 = vmatpush1.msra.mxu0 0.0
    %386 = vmatprep.subr.mxu0 0.0
    %387 = vmatpush1.msra.mxu0 0.0
    %388 = vmatprep.subr.mxu0 0.0
    %389 = vmatpush1.msra.mxu0 0.0
    %390 = vmatprep.subr.mxu0 0.0
    %391 = vmatpush1.msra.mxu0 0.0
    %392 = vmatprep.subr.mxu0 0.0
    %393 = vmatpush1.msra.mxu0 0.0
    %394 = vmatprep.subr.mxu0 0.0
    %395 = vmatpush1.msra.mxu0 0.0
    %396 = vmatprep.subr.mxu0 0.0
    %397 = vmatpush1.msra.mxu0 0.0
    %398 = vmatprep.subr.mxu0 0.0
    %399 = vmatpush1.msra.mxu0 0.0
    %400 = vmatprep.subr.mxu0 0.0
    %401 = vmatpush1.msra.mxu0 0.0
    %402 = vmatprep.subr.mxu0 0.0
    %403 = vmatpush1.msra.mxu0 0.0
    %404 = vmatprep.subr.mxu0 0.0
    %405 = vmatpush1.msra.mxu0 0.0
    %406 = vmatprep.subr.mxu0 0.0
    %407 = vmatpush1.msra.mxu0 0.0
    %408 = vmatprep.subr.mxu0 0.0
    %409 = vmatpush1.msra.mxu0 0.0
    %410 = vmatprep.subr.mxu0 0.0
    %411 = vmatpush1.msra.mxu0 0.0
    %412 = vmatprep.subr.mxu0 0.0
    %413 = vmatpush1.msra.mxu0 0.0
    %414 = vmatprep.subr.mxu0 0.0
    %415 = vmatpush1.msra.mxu0 0.0
    %416 = vmatprep.subr.mxu0 0.0
    %417 = vmatpush1.msra.mxu0 0.0
    %418 = vmatprep.subr.mxu0 0.0
    %419 = vmatpush1.msra.mxu0 0.0
    %420 = vmatprep.subr.mxu0 0.0
    %421 = vmatpush1.msra.mxu0 0.0
    %422 = vmatprep.subr.mxu0 0.0
    %423 = vmatpush1.msra.mxu0 0.0
    %424 = vmatprep.subr.mxu0 0.0
    %425 = vmatpush1.msra.mxu0 0.0
    %426 = vmatprep.mubr.f32.mxu0 0.0
    %427 = vmatmul.mubr.f32.gmra.mrb[0].mxu0 %v360
    %v428 = vpop.f32.mrb[0].mxu0
    %v429 = vadd.f32 0.0, %v428
    %v430 = vpop.f32.mrb[0].mxu0
    %431 = vdwg.mxu0
    %v432 = vadd.f32 %v358, %v429
    %v433 = vtanh.pop %v432
    %434 = vst.msk [vmem:[#allocation3 + $0x1] sm:$0x1] %vm356, %v433
    %v435 = vld [vmem:[#allocation2 + $0x2] sm:$0x1]
    %v437 = vsel %vm280, %v433, 0
    %439 = vmatprep.subr.mxu0 0.0
    %440 = vmatpush1.msra.mxu0 %v42
    %441 = vmatprep.subr.mxu0 0.0
    %442 = vmatpush1.msra.mxu0 %v43
    %443 = vmatprep.subr.mxu0 0.0
    %444 = vmatpush1.msra.mxu0 %v44
    %445 = vmatprep.subr.mxu0 0.0
    %446 = vmatpush1.msra.mxu0 %v45
    %447 = vmatprep.subr.mxu0 0.0
    %448 = vmatpush1.msra.mxu0 %v46
    %449 = vmatprep.subr.mxu0 0.0
    %450 = vmatpush1.msra.mxu0 0.0
    %451 = vmatprep.subr.mxu0 0.0
    %452 = vmatpush1.msra.mxu0 0.0
    %453 = vmatprep.subr.mxu0 0.0
    %454 = vmatpush1.msra.mxu0 0.0
    %455 = vmatprep.subr.mxu0 0.0
    %456 = vmatpush1.msra.mxu0 0.0
    %457 = vmatprep.subr.mxu0 0.0
    %458 = vmatpush1.msra.mxu0 0.0
    %459 = vmatprep.subr.mxu0 0.0
    %460 = vmatpush1.msra.mxu0 0.0
    %461 = vmatprep.subr.mxu0 0.0
    %462 = vmatpush1.msra.mxu0 0.0
    %463 = vmatprep.subr.mxu0 0.0
    %464 = vmatpush1.msra.mxu0 0.0
    %465 = vmatprep.subr.mxu0 0.0
    %466 = vmatpush1.msra.mxu0 0.0
    %467 = vmatprep.subr.mxu0 0.0
    %468 = vmatpush1.msra.mxu0 0.0
    %469 = vmatprep.subr.mxu0 0.0
    %470 = vmatpush1.msra.mxu0 0.0
    %471 = vmatprep.subr.mxu0 0.0
    %472 = vmatpush1.msra.mxu0 0.0
    %473 = vmatprep.subr.mxu0 0.0
    %474 = vmatpush1.msra.mxu0 0.0
    %475 = vmatprep.subr.mxu0 0.0
    %476 = vmatpush1.msra.mxu0 0.0
    %477 = vmatprep.subr.mxu0 0.0
    %478 = vmatpush1.msra.mxu0 0.0
    %479 = vmatprep.subr.mxu0 0.0
    %480 = vmatpush1.msra.mxu0 0.0
    %481 = vmatprep.subr.mxu0 0.0
    %482 = vmatpush1.msra.mxu0 0.0
    %483 = vmatprep.subr.mxu0 0.0
    %484 = vmatpush1.msra.mxu0 0.0
    %485 = vmatprep.subr.mxu0 0.0
    %486 = vmatpush1.msra.mxu0 0.0
    %487 = vmatprep.subr.mxu0 0.0
    %488 = vmatpush1.msra.mxu0 0.0
    %489 = vmatprep.subr.mxu0 0.0
    %490 = vmatpush1.msra.mxu0 0.0
    %491 = vmatprep.subr.mxu0 0.0
    %492 = vmatpush1.msra.mxu0 0.0
    %493 = vmatprep.subr.mxu0 0.0
    %494 = vmatpush1.msra.mxu0 0.0
    %495 = vmatprep.subr.mxu0 0.0
    %496 = vmatpush1.msra.mxu0 0.0
    %497 = vmatprep.subr.mxu0 0.0
    %498 = vmatpush1.msra.mxu0 0.0
    %499 = vmatprep.subr.mxu0 0.0
    %500 = vmatpush1.msra.mxu0 0.0
    %501 = vmatprep.subr.mxu0 0.0
    %502 = vmatpush1.msra.mxu0 0.0
    %503 = vmatprep.mubr.f32.mxu0 0.0
    %504 = vmatmul.mubr.f32.gmra.mrb[0].mxu0 %v437
    %v505 = vpop.f32.mrb[0].mxu0
    %v506 = vadd.f32 0.0, %v505
    %v507 = vpop.f32.mrb[0].mxu0
    %508 = vdwg.mxu0
    %v509 = vadd.f32 %v435, %v506
    %v510 = vtanh.pop %v509
    %511 = vst.msk [vmem:[#allocation3 + $0x2] sm:$0x1] %vm356, %v510
    %v512 = vld [vmem:[#allocation2 + $0x3] sm:$0x1]
    %v514 = vsel %vm280, %v510, 0
    %516 = vmatprep.subr.mxu0 0.0
    %517 = vmatpush1.msra.mxu0 %v42
    %518 = vmatprep.subr.mxu0 0.0
    %519 = vmatpush1.msra.mxu0 %v43
    %520 = vmatprep.subr.mxu0 0.0
    %521 = vmatpush1.msra.mxu0 %v44
    %522 = vmatprep.subr.mxu0 0.0
    %523 = vmatpush1.msra.mxu0 %v45
    %524 = vmatprep.subr.mxu0 0.0
    %525 = vmatpush1.msra.mxu0 %v46
    %526 = vmatprep.subr.mxu0 0.0
    %527 = vmatpush1.msra.mxu0 0.0
    %528 = vmatprep.subr.mxu0 0.0
    %529 = vmatpush1.msra.mxu0 0.0
    %530 = vmatprep.subr.mxu0 0.0
    %531 = vmatpush1.msra.mxu0 0.0
    %532 = vmatprep.subr.mxu0 0.0
    %533 = vmatpush1.msra.mxu0 0.0
    %534 = vmatprep.subr.mxu0 0.0
    %535 = vmatpush1.msra.mxu0 0.0
    %536 = vmatprep.subr.mxu0 0.0
    %537 = vmatpush1.msra.mxu0 0.0
    %538 = vmatprep.subr.mxu0 0.0
    %539 = vmatpush1.msra.mxu0 0.0
    %540 = vmatprep.subr.mxu0 0.0
    %541 = vmatpush1.msra.mxu0 0.0
    %542 = vmatprep.subr.mxu0 0.0
    %543 = vmatpush1.msra.mxu0 0.0
    %544 = vmatprep.subr.mxu0 0.0
    %545 = vmatpush1.msra.mxu0 0.0
    %546 = vmatprep.subr.mxu0 0.0
    %547 = vmatpush1.msra.mxu0 0.0
    %548 = vmatprep.subr.mxu0 0.0
    %549 = vmatpush1.msra.mxu0 0.0
    %550 = vmatprep.subr.mxu0 0.0
    %551 = vmatpush1.msra.mxu0 0.0
    %552 = vmatprep.subr.mxu0 0.0
    %553 = vmatpush1.msra.mxu0 0.0
    %554 = vmatprep.subr.mxu0 0.0
    %555 = vmatpush1.msra.mxu0 0.0
    %556 = vmatprep.subr.mxu0 0.0
    %557 = vmatpush1.msra.mxu0 0.0
    %558 = vmatprep.subr.mxu0 0.0
    %559 = vmatpush1.msra.mxu0 0.0
    %560 = vmatprep.subr.mxu0 0.0
    %561 = vmatpush1.msra.mxu0 0.0
    %562 = vmatprep.subr.mxu0 0.0
    %563 = vmatpush1.msra.mxu0 0.0
    %564 = vmatprep.subr.mxu0 0.0
    %565 = vmatpush1.msra.mxu0 0.0
    %566 = vmatprep.subr.mxu0 0.0
    %567 = vmatpush1.msra.mxu0 0.0
    %568 = vmatprep.subr.mxu0 0.0
    %569 = vmatpush1.msra.mxu0 0.0
    %570 = vmatprep.subr.mxu0 0.0
    %571 = vmatpush1.msra.mxu0 0.0
    %572 = vmatprep.subr.mxu0 0.0
    %573 = vmatpush1.msra.mxu0 0.0
    %574 = vmatprep.subr.mxu0 0.0
    %575 = vmatpush1.msra.mxu0 0.0
    %576 = vmatprep.subr.mxu0 0.0
    %577 = vmatpush1.msra.mxu0 0.0
    %578 = vmatprep.subr.mxu0 0.0
    %579 = vmatpush1.msra.mxu0 0.0
    %580 = vmatprep.mubr.f32.mxu0 0.0
    %581 = vmatmul.mubr.f32.gmra.mrb[0].mxu0 %v514
    %v582 = vpop.f32.mrb[0].mxu0
    %v583 = vadd.f32 0.0, %v582
    %v584 = vpop.f32.mrb[0].mxu0
    %585 = vdwg.mxu0
    %v586 = vadd.f32 %v512, %v583
    %v587 = vtanh.pop %v586
    %588 = vst.msk [vmem:[#allocation3 + $0x3] sm:$0x1] %vm356, %v587
    %v589 = vld [vmem:[#allocation2 + $0x4] sm:$0x1]
    %v591 = vsel %vm280, %v587, 0
    %593 = vmatprep.subr.mxu0 0.0
    %594 = vmatpush1.msra.mxu0 %v42
    %595 = vmatprep.subr.mxu0 0.0
    %596 = vmatpush1.msra.mxu0 %v43
    %597 = vmatprep.subr.mxu0 0.0
    %598 = vmatpush1.msra.mxu0 %v44
    %599 = vmatprep.subr.mxu0 0.0
    %600 = vmatpush1.msra.mxu0 %v45
    %601 = vmatprep.subr.mxu0 0.0
    %602 = vmatpush1.msra.mxu0 %v46
    %603 = vmatprep.subr.mxu0 0.0
    %604 = vmatpush1.msra.mxu0 0.0
    %605 = vmatprep.subr.mxu0 0.0
    %606 = vmatpush1.msra.mxu0 0.0
    %607 = vmatprep.subr.mxu0 0.0
    %608 = vmatpush1.msra.mxu0 0.0
    %609 = vmatprep.subr.mxu0 0.0
    %610 = vmatpush1.msra.mxu0 0.0
    %611 = vmatprep.subr.mxu0 0.0
    %612 = vmatpush1.msra.mxu0 0.0
    %613 = vmatprep.subr.mxu0 0.0
    %614 = vmatpush1.msra.mxu0 0.0
    %615 = vmatprep.subr.mxu0 0.0
    %616 = vmatpush1.msra.mxu0 0.0
    %617 = vmatprep.subr.mxu0 0.0
    %618 = vmatpush1.msra.mxu0 0.0
    %619 = vmatprep.subr.mxu0 0.0
    %620 = vmatpush1.msra.mxu0 0.0
    %621 = vmatprep.subr.mxu0 0.0
    %622 = vmatpush1.msra.mxu0 0.0
    %623 = vmatprep.subr.mxu0 0.0
    %624 = vmatpush1.msra.mxu0 0.0
    %625 = vmatprep.subr.mxu0 0.0
    %626 = vmatpush1.msra.mxu0 0.0
    %627 = vmatprep.subr.mxu0 0.0
    %628 = vmatpush1.msra.mxu0 0.0
    %629 = vmatprep.subr.mxu0 0.0
    %630 = vmatpush1.msra.mxu0 0.0
    %631 = vmatprep.subr.mxu0 0.0
    %632 = vmatpush1.msra.mxu0 0.0
    %633 = vmatprep.subr.mxu0 0.0
    %634 = vmatpush1.msra.mxu0 0.0
    %635 = vmatprep.subr.mxu0 0.0
    %636 = vmatpush1.msra.mxu0 0.0
    %637 = vmatprep.subr.mxu0 0.0
    %638 = vmatpush1.msra.mxu0 0.0
    %639 = vmatprep.subr.mxu0 0.0
    %640 = vmatpush1.msra.mxu0 0.0
    %641 = vmatprep.subr.mxu0 0.0
    %642 = vmatpush1.msra.mxu0 0.0
    %643 = vmatprep.subr.mxu0 0.0
    %644 = vmatpush1.msra.mxu0 0.0
    %645 = vmatprep.subr.mxu0 0.0
    %646 = vmatpush1.msra.mxu0 0.0
    %647 = vmatprep.subr.mxu0 0.0
    %648 = vmatpush1.msra.mxu0 0.0
    %649 = vmatprep.subr.mxu0 0.0
    %650 = vmatpush1.msra.mxu0 0.0
    %651 = vmatprep.subr.mxu0 0.0
    %652 = vmatpush1.msra.mxu0 0.0
    %653 = vmatprep.subr.mxu0 0.0
    %654 = vmatpush1.msra.mxu0 0.0
    %655 = vmatprep.subr.mxu0 0.0
    %656 = vmatpush1.msra.mxu0 0.0
    %657 = vmatprep.mubr.f32.mxu0 0.0
    %658 = vmatmul.mubr.f32.gmra.mrb[0].mxu0 %v591
    %v659 = vpop.f32.mrb[0].mxu0
    %v660 = vadd.f32 0.0, %v659
    %v661 = vpop.f32.mrb[0].mxu0
    %662 = vdwg.mxu0
    %v663 = vadd.f32 %v589, %v660
    %v664 = vtanh.pop %v663
    %665 = vst.msk [vmem:[#allocation3 + $0x4] sm:$0x1] %vm356, %v664
    %v666 = vld [vmem:[#allocation2 + $0x5] sm:$0x1]
    %v668 = vsel %vm280, %v664, 0
    %670 = vmatprep.subr.mxu0 0.0
    %671 = vmatpush1.msra.mxu0 %v42
    %672 = vmatprep.subr.mxu0 0.0
    %673 = vmatpush1.msra.mxu0 %v43
    %674 = vmatprep.subr.mxu0 0.0
    %675 = vmatpush1.msra.mxu0 %v44
    %676 = vmatprep.subr.mxu0 0.0
    %677 = vmatpush1.msra.mxu0 %v45
    %678 = vmatprep.subr.mxu0 0.0
    %679 = vmatpush1.msra.mxu0 %v46
    %680 = vmatprep.subr.mxu0 0.0
    %681 = vmatpush1.msra.mxu0 0.0
    %682 = vmatprep.subr.mxu0 0.0
    %683 = vmatpush1.msra.mxu0 0.0
    %684 = vmatprep.subr.mxu0 0.0
    %685 = vmatpush1.msra.mxu0 0.0
    %686 = vmatprep.subr.mxu0 0.0
    %687 = vmatpush1.msra.mxu0 0.0
    %688 = vmatprep.subr.mxu0 0.0
    %689 = vmatpush1.msra.mxu0 0.0
    %690 = vmatprep.subr.mxu0 0.0
    %691 = vmatpush1.msra.mxu0 0.0
    %692 = vmatprep.subr.mxu0 0.0
    %693 = vmatpush1.msra.mxu0 0.0
    %694 = vmatprep.subr.mxu0 0.0
    %695 = vmatpush1.msra.mxu0 0.0
    %696 = vmatprep.subr.mxu0 0.0
    %697 = vmatpush1.msra.mxu0 0.0
    %698 = vmatprep.subr.mxu0 0.0
    %699 = vmatpush1.msra.mxu0 0.0
    %700 = vmatprep.subr.mxu0 0.0
    %701 = vmatpush1.msra.mxu0 0.0
    %702 = vmatprep.subr.mxu0 0.0
    %703 = vmatpush1.msra.mxu0 0.0
    %704 = vmatprep.subr.mxu0 0.0
    %705 = vmatpush1.msra.mxu0 0.0
    %706 = vmatprep.subr.mxu0 0.0
    %707 = vmatpush1.msra.mxu0 0.0
    %708 = vmatprep.subr.mxu0 0.0
    %709 = vmatpush1.msra.mxu0 0.0
    %710 = vmatprep.subr.mxu0 0.0
    %711 = vmatpush1.msra.mxu0 0.0
    %712 = vmatprep.subr.mxu0 0.0
    %713 = vmatpush1.msra.mxu0 0.0
    %714 = vmatprep.subr.mxu0 0.0
    %715 = vmatpush1.msra.mxu0 0.0
    %716 = vmatprep.subr.mxu0 0.0
    %717 = vmatpush1.msra.mxu0 0.0
    %718 = vmatprep.subr.mxu0 0.0
    %719 = vmatpush1.msra.mxu0 0.0
    %720 = vmatprep.subr.mxu0 0.0
    %721 = vmatpush1.msra.mxu0 0.0
    %722 = vmatprep.subr.mxu0 0.0
    %723 = vmatpush1.msra.mxu0 0.0
    %724 = vmatprep.subr.mxu0 0.0
    %725 = vmatpush1.msra.mxu0 0.0
    %726 = vmatprep.subr.mxu0 0.0
    %727 = vmatpush1.msra.mxu0 0.0
    %728 = vmatprep.subr.mxu0 0.0
    %729 = vmatpush1.msra.mxu0 0.0
    %730 = vmatprep.subr.mxu0 0.0
    %731 = vmatpush1.msra.mxu0 0.0
    %732 = vmatprep.subr.mxu0 0.0
    %733 = vmatpush1.msra.mxu0 0.0
    %734 = vmatprep.mubr.f32.mxu0 0.0
    %735 = vmatmul.mubr.f32.gmra.mrb[0].mxu0 %v668
    %v736 = vpop.f32.mrb[0].mxu0
    %v737 = vadd.f32 0.0, %v736
    %v738 = vpop.f32.mrb[0].mxu0
    %739 = vdwg.mxu0
    %v740 = vadd.f32 %v666, %v737
    %v741 = vtanh.pop %v740
    %742 = vst.msk [vmem:[#allocation3 + $0x5] sm:$0x1] %vm356, %v741
    %v743 = vld [vmem:[#allocation2 + $0x6] sm:$0x1]
    %v745 = vsel %vm280, %v741, 0
    %747 = vmatprep.subr.mxu0 0.0
    %748 = vmatpush1.msra.mxu0 %v42
    %749 = vmatprep.subr.mxu0 0.0
    %750 = vmatpush1.msra.mxu0 %v43
    %751 = vmatprep.subr.mxu0 0.0
    %752 = vmatpush1.msra.mxu0 %v44
    %753 = vmatprep.subr.mxu0 0.0
    %754 = vmatpush1.msra.mxu0 %v45
    %755 = vmatprep.subr.mxu0 0.0
    %756 = vmatpush1.msra.mxu0 %v46
    %757 = vmatprep.subr.mxu0 0.0
    %758 = vmatpush1.msra.mxu0 0.0
    %759 = vmatprep.subr.mxu0 0.0
    %760 = vmatpush1.msra.mxu0 0.0
    %761 = vmatprep.subr.mxu0 0.0
    %762 = vmatpush1.msra.mxu0 0.0
    %763 = vmatprep.subr.mxu0 0.0
    %764 = vmatpush1.msra.mxu0 0.0
    %765 = vmatprep.subr.mxu0 0.0
    %766 = vmatpush1.msra.mxu0 0.0
    %767 = vmatprep.subr.mxu0 0.0
    %768 = vmatpush1.msra.mxu0 0.0
    %769 = vmatprep.subr.mxu0 0.0
    %770 = vmatpush1.msra.mxu0 0.0
    %771 = vmatprep.subr.mxu0 0.0
    %772 = vmatpush1.msra.mxu0 0.0
    %773 = vmatprep.subr.mxu0 0.0
    %774 = vmatpush1.msra.mxu0 0.0
    %775 = vmatprep.subr.mxu0 0.0
    %776 = vmatpush1.msra.mxu0 0.0
    %777 = vmatprep.subr.mxu0 0.0
    %778 = vmatpush1.msra.mxu0 0.0
    %779 = vmatprep.subr.mxu0 0.0
    %780 = vmatpush1.msra.mxu0 0.0
    %781 = vmatprep.subr.mxu0 0.0
    %782 = vmatpush1.msra.mxu0 0.0
    %783 = vmatprep.subr.mxu0 0.0
    %784 = vmatpush1.msra.mxu0 0.0
    %785 = vmatprep.subr.mxu0 0.0
    %786 = vmatpush1.msra.mxu0 0.0
    %787 = vmatprep.subr.mxu0 0.0
    %788 = vmatpush1.msra.mxu0 0.0
    %789 = vmatprep.subr.mxu0 0.0
    %790 = vmatpush1.msra.mxu0 0.0
    %791 = vmatprep.subr.mxu0 0.0
    %792 = vmatpush1.msra.mxu0 0.0
    %793 = vmatprep.subr.mxu0 0.0
    %794 = vmatpush1.msra.mxu0 0.0
    %795 = vmatprep.subr.mxu0 0.0
    %796 = vmatpush1.msra.mxu0 0.0
    %797 = vmatprep.subr.mxu0 0.0
    %798 = vmatpush1.msra.mxu0 0.0
    %799 = vmatprep.subr.mxu0 0.0
    %800 = vmatpush1.msra.mxu0 0.0
    %801 = vmatprep.subr.mxu0 0.0
    %802 = vmatpush1.msra.mxu0 0.0
    %803 = vmatprep.subr.mxu0 0.0
    %804 = vmatpush1.msra.mxu0 0.0
    %805 = vmatprep.subr.mxu0 0.0
    %806 = vmatpush1.msra.mxu0 0.0
    %807 = vmatprep.subr.mxu0 0.0
    %808 = vmatpush1.msra.mxu0 0.0
    %809 = vmatprep.subr.mxu0 0.0
    %810 = vmatpush1.msra.mxu0 0.0
    %811 = vmatprep.mubr.f32.mxu0 0.0
    %812 = vmatmul.mubr.f32.gmra.mrb[0].mxu0 %v745
    %v813 = vpop.f32.mrb[0].mxu0
    %v814 = vadd.f32 0.0, %v813
    %v815 = vpop.f32.mrb[0].mxu0
    %816 = vdwg.mxu0
    %v817 = vadd.f32 %v743, %v814
    %v818 = vtanh.pop %v817
    %819 = vst.msk [vmem:[#allocation3 + $0x6] sm:$0x1] %vm356, %v818
    %v820 = vld [vmem:[#allocation2 + $0x7] sm:$0x1]
    %v822 = vsel %vm280, %v818, 0
    %824 = vmatprep.subr.mxu0 0.0
    %825 = vmatpush1.msra.mxu0 %v42
    %826 = vmatprep.subr.mxu0 0.0
    %827 = vmatpush1.msra.mxu0 %v43
    %828 = vmatprep.subr.mxu0 0.0
    %829 = vmatpush1.msra.mxu0 %v44
    %830 = vmatprep.subr.mxu0 0.0
    %831 = vmatpush1.msra.mxu0 %v45
    %832 = vmatprep.subr.mxu0 0.0
    %833 = vmatpush1.msra.mxu0 %v46
    %834 = vmatprep.subr.mxu0 0.0
    %835 = vmatpush1.msra.mxu0 0.0
    %836 = vmatprep.subr.mxu0 0.0
    %837 = vmatpush1.msra.mxu0 0.0
    %838 = vmatprep.subr.mxu0 0.0
    %839 = vmatpush1.msra.mxu0 0.0
    %840 = vmatprep.subr.mxu0 0.0
    %841 = vmatpush1.msra.mxu0 0.0
    %842 = vmatprep.subr.mxu0 0.0
    %843 = vmatpush1.msra.mxu0 0.0
    %844 = vmatprep.subr.mxu0 0.0
    %845 = vmatpush1.msra.mxu0 0.0
    %846 = vmatprep.subr.mxu0 0.0
    %847 = vmatpush1.msra.mxu0 0.0
    %848 = vmatprep.subr.mxu0 0.0
    %849 = vmatpush1.msra.mxu0 0.0
    %850 = vmatprep.subr.mxu0 0.0
    %851 = vmatpush1.msra.mxu0 0.0
    %852 = vmatprep.subr.mxu0 0.0
    %853 = vmatpush1.msra.mxu0 0.0
    %854 = vmatprep.subr.mxu0 0.0
    %855 = vmatpush1.msra.mxu0 0.0
    %856 = vmatprep.subr.mxu0 0.0
    %857 = vmatpush1.msra.mxu0 0.0
    %858 = vmatprep.subr.mxu0 0.0
    %859 = vmatpush1.msra.mxu0 0.0
    %860 = vmatprep.subr.mxu0 0.0
    %861 = vmatpush1.msra.mxu0 0.0
    %862 = vmatprep.subr.mxu0 0.0
    %863 = vmatpush1.msra.mxu0 0.0
    %864 = vmatprep.subr.mxu0 0.0
    %865 = vmatpush1.msra.mxu0 0.0
    %866 = vmatprep.subr.mxu0 0.0
    %867 = vmatpush1.msra.mxu0 0.0
    %868 = vmatprep.subr.mxu0 0.0
    %869 = vmatpush1.msra.mxu0 0.0
    %870 = vmatprep.subr.mxu0 0.0
    %871 = vmatpush1.msra.mxu0 0.0
    %872 = vmatprep.subr.mxu0 0.0
    %873 = vmatpush1.msra.mxu0 0.0
    %874 = vmatprep.subr.mxu0 0.0
    %875 = vmatpush1.msra.mxu0 0.0
    %876 = vmatprep.subr.mxu0 0.0
    %877 = vmatpush1.msra.mxu0 0.0
    %878 = vmatprep.subr.mxu0 0.0
    %879 = vmatpush1.msra.mxu0 0.0
    %880 = vmatprep.subr.mxu0 0.0
    %881 = vmatpush1.msra.mxu0 0.0
    %882 = vmatprep.subr.mxu0 0.0
    %883 = vmatpush1.msra.mxu0 0.0
    %884 = vmatprep.subr.mxu0 0.0
    %885 = vmatpush1.msra.mxu0 0.0
    %886 = vmatprep.subr.mxu0 0.0
    %887 = vmatpush1.msra.mxu0 0.0
    %888 = vmatprep.mubr.f32.mxu0 0.0
    %889 = vmatmul.mubr.f32.gmra.mrb[0].mxu0 %v822
    %v890 = vpop.f32.mrb[0].mxu0
    %v891 = vadd.f32 0.0, %v890
    %v892 = vpop.f32.mrb[0].mxu0
    %893 = vdwg.mxu0
    %v894 = vadd.f32 %v820, %v891
    %v895 = vtanh.pop %v894
    %896 = vst.msk [vmem:[#allocation3 + $0x7] sm:$0x1] %vm356, %v895
    %897 = vst.msk [vmem:[#allocation4] sm:$0x1] %vm356, %v895
    %v898 = vld [vmem:[#allocation3] sm:$0xff]
    %v900 = vlaneseq
    %v901 = vshrl.u32 %v900, 7
    %v902 = vsub.s32 0, %v901
    %v903 = vrot.slane %v52, %v902
    %904 = vset.pattern.permute.xlu0 0
    %905 = vperm.xlu0 %904, %v903
    %v906 = vpop.permute.xlu0 %905
    %v909 = vsel %vm280, %v898, 0
    %911 = vmatprep.subr.mxu0 0.0
    %912 = vmatpush1.msra.mxu0 %v47
    %913 = vmatprep.subr.mxu0 0.0
    %914 = vmatpush1.msra.mxu0 %v48
    %915 = vmatprep.subr.mxu0 0.0
    %916 = vmatpush1.msra.mxu0 %v49
    %917 = vmatprep.subr.mxu0 0.0
    %918 = vmatpush1.msra.mxu0 %v50
    %919 = vmatprep.subr.mxu0 0.0
    %920 = vmatpush1.msra.mxu0 %v51
    %921 = vmatprep.subr.mxu0 0.0
    %922 = vmatpush1.msra.mxu0 0.0
    %923 = vmatprep.subr.mxu0 0.0
    %924 = vmatpush1.msra.mxu0 0.0
    %925 = vmatprep.subr.mxu0 0.0
    %926 = vmatpush1.msra.mxu0 0.0
    %927 = vmatprep.subr.mxu0 0.0
    %928 = vmatpush1.msra.mxu0 0.0
    %929 = vmatprep.subr.mxu0 0.0
    %930 = vmatpush1.msra.mxu0 0.0
    %931 = vmatprep.subr.mxu0 0.0
    %932 = vmatpush1.msra.mxu0 0.0
    %933 = vmatprep.subr.mxu0 0.0
    %934 = vmatpush1.msra.mxu0 0.0
    %935 = vmatprep.subr.mxu0 0.0
    %936 = vmatpush1.msra.mxu0 0.0
    %937 = vmatprep.subr.mxu0 0.0
    %938 = vmatpush1.msra.mxu0 0.0
    %939 = vmatprep.subr.mxu0 0.0
    %940 = vmatpush1.msra.mxu0 0.0
    %941 = vmatprep.subr.mxu0 0.0
    %942 = vmatpush1.msra.mxu0 0.0
    %943 = vmatprep.subr.mxu0 0.0
    %944 = vmatpush1.msra.mxu0 0.0
    %945 = vmatprep.subr.mxu0 0.0
    %946 = vmatpush1.msra.mxu0 0.0
    %947 = vmatprep.subr.mxu0 0.0
    %948 = vmatpush1.msra.mxu0 0.0
    %949 = vmatprep.subr.mxu0 0.0
    %950 = vmatpush1.msra.mxu0 0.0
    %951 = vmatprep.subr.mxu0 0.0
    %952 = vmatpush1.msra.mxu0 0.0
    %953 = vmatprep.subr.mxu0 0.0
    %954 = vmatpush1.msra.mxu0 0.0
    %955 = vmatprep.subr.mxu0 0.0
    %956 = vmatpush1.msra.mxu0 0.0
    %957 = vmatprep.subr.mxu0 0.0
    %958 = vmatpush1.msra.mxu0 0.0
    %959 = vmatprep.subr.mxu0 0.0
    %960 = vmatpush1.msra.mxu0 0.0
    %961 = vmatprep.subr.mxu0 0.0
    %962 = vmatpush1.msra.mxu0 0.0
    %963 = vmatprep.subr.mxu0 0.0
    %964 = vmatpush1.msra.mxu0 0.0
    %965 = vmatprep.subr.mxu0 0.0
    %966 = vmatpush1.msra.mxu0 0.0
    %967 = vmatprep.subr.mxu0 0.0
    %968 = vmatpush1.msra.mxu0 0.0
    %969 = vmatprep.subr.mxu0 0.0
    %970 = vmatpush1.msra.mxu0 0.0
    %971 = vmatprep.subr.mxu0 0.0
    %972 = vmatpush1.msra.mxu0 0.0
    %973 = vmatprep.subr.mxu0 0.0
    %974 = vmatpush1.msra.mxu0 0.0
    %975 = vmatprep.mubr.f32.mxu0 0.0
    %976 = vmatmul.mubr.f32.gmra.mrb[0].mxu0 %v909
    %v977 = vpop.f32.mrb[0].mxu0
    %v978 = vadd.f32 %v906, %v977
    %v979 = vpop.f32.mrb[0].mxu0
    %980 = vdwg.mxu0
    %981 = vxpose.xlu0.b32.start [1/16] %v978, 128
    %982 = vxpose.xlu0.b32.cont [2/16] 0.0, 128
    %983 = vxpose.xlu0.b32.cont [3/16] 0.0, 128
    %984 = vxpose.xlu0.b32.cont [4/16] 0.0, 128
    %985 = vxpose.xlu0.b32.cont [5/16] 0.0, 128
    %986 = vxpose.xlu0.b32.cont [6/16] 0.0, 128
    %987 = vxpose.xlu0.b32.cont [7/16] 0.0, 128
    %988 = vxpose.xlu0.b32.cont [8/16] 0.0, 128
    %989 = vxpose.xlu0.b32.cont [9/16] 0.0, 128
    %990 = vxpose.xlu0.b32.cont [10/16] 0.0, 128
    %991 = vxpose.xlu0.b32.cont [11/16] 0.0, 128
    %992 = vxpose.xlu0.b32.cont [12/16] 0.0, 128
    %993 = vxpose.xlu0.b32.cont [13/16] 0.0, 128
    %994 = vxpose.xlu0.b32.cont [14/16] 0.0, 128
    %995 = vxpose.xlu0.b32.cont [15/16] 0.0, 128
    %996 = vxpose.xlu0.b32.end [16/16] 0.0, 128
    %v997 = vpop.trf.xlu0
    %v998 = vpop.trf.xlu0
    %v999 = vpop.trf.xlu0
    %v1000 = vpop.trf.xlu0
    %v1001 = vpop.trf.xlu0
    %v1002 = vpop.trf.xlu0
    %v1003 = vpop.trf.xlu0
    %v1004 = vpop.trf.xlu0
    %v1005 = vpop.trf.xlu0
    %v1006 = vpop.trf.xlu0
    %v1007 = vpop.trf.xlu0
    %v1008 = vpop.trf.xlu0
    %v1009 = vpop.trf.xlu0
    %v1010 = vpop.trf.xlu0
    %v1011 = vpop.trf.xlu0
    %v1012 = vpop.trf.xlu0
    %vm1013 = vcmask 58368
    %1014 = vst.msk [vmem:[#allocation6] sm:$0x3] %vm1013, %v997
    // Predicated region
    $region38: #{column_forward.1} parent=1 // pred_check
      _
    $region39: #{column_forward.1} parent=1 // pred_check_branch
      %1016 = sbr.rel (0) target = $region41
    $region40: #{column_forward.1} parent=1 // pred_region
      %s1018 = ssub.s32 32, 32
      %1019 = vsyncadd [#allocation7], %s1018
      %s1021 = sshll.u32 [#allocation6], 4
      %s1022 = int_to_ptr.vmem [resolvable:$true] %s1021
      %1024 = dma.vmem_to_hbm [thread:$0]  %s1022, 32, %s8, [#allocation7]
    $region41: #{column_forward.1} parent=1 // pred_fallthru
      _
    // Predicated region
    $region42: #{column_forward.1} parent=1 // pred_check
      _
    $region43: #{column_forward.1} parent=1 // pred_check_branch
      %1026 = sbr.rel (0) target = $region45
    $region44: #{column_forward.1} parent=1 // pred_region
      %1027 = dma.done [#allocation7], 32
    $region45: #{column_forward.1} parent=1 // pred_fallthru
      _
    %1028 = vsyncpa [#allocation7], 1

</llo_original>
